<compile_context>
chip_gen: v5e
topology: v5e:2x2
jax: 0.10.0
libtpu: 0.0.40
codegen_flags: <defaults>
</compile_context>

<pallas_src>
import numpy as np
import jax
import jax.numpy as jnp
from jax.experimental import pallas as pl
from jax.experimental.pallas import tpu as pltpu


# ---------------------------------------------------------------------------
# Filter construction (deterministic, matches the PyTorch __init__)
# ---------------------------------------------------------------------------
def create_binomial_filter(filt_size: int) -> np.ndarray:
    if filt_size == 1:
        return np.array([1.0])
    a = np.array([1.0])
    for _ in range(1, filt_size):
        a = np.convolve(a, np.array([1.0, 1.0]))
    return a / a.sum()


def _pad_sizes(filt_size: int, pad_off: int):
    ps = [int((filt_size - 1) / 2), int(np.ceil((filt_size - 1) / 2))] * 2
    return [p + pad_off for p in ps]  # [left, right, top, bottom]


_JNP_PAD_MODE = {
    "reflect": "reflect", "refl": "reflect",
    "replicate": "edge", "repl": "edge",
    "zero": "constant",
}


def _fold_pad_index(pos, size, mode):
    """Map a (possibly out-of-range) index through the padding function.

    Returns the source index in [0, size) it reads from, or None if the
    padded element is a zero (zero padding).
    """
    if mode == "constant":                 # zero padding
        return pos if 0 <= pos < size else None
    if mode == "edge":                     # replicate
        return min(max(pos, 0), size - 1)
    # reflect (no edge repeat) -- matches torch.nn.ReflectionPad2d / np reflect
    if size == 1:
        return 0
    period = 2 * (size - 1)
    pos = pos % period
    return pos if pos < size else period - pos


def _conv_matrices(filt_size, stride, h, w, ho, wo, top, left, mode):
    """Separable taps with BOTH the stride and the padding folded in.

    mh[w_src, j] = sum of taps a[k] whose padded column (j*stride + k) reads
    original column w_src (analogously mv[i, h_src] for rows).
    """
    a = create_binomial_filter(filt_size).astype(np.float64)  # sums to 1
    mh = np.zeros((w, wo), np.float64)
    for j in range(wo):
        for k in range(filt_size):
            src = _fold_pad_index(j * stride + k - left, w, mode)
            if src is not None:
                mh[src, j] += a[k]
    mv = np.zeros((ho, h), np.float64)
    for i in range(ho):
        for k in range(filt_size):
            src = _fold_pad_index(i * stride + k - top, h, mode)
            if src is not None:
                mv[i, src] += a[k]
    return mh, mv


# ---------------------------------------------------------------------------
# Pallas kernel: separable strided+padded binomial blur for one
# (batch, channel-tile) block.  All VMEM accesses are contiguous; both passes
# are MXU matmuls with f32 accumulation, input kept in its native dtype.
# ---------------------------------------------------------------------------
def _blurpool_kernel(x_ref, mh_ref, mv_ref, o_ref):
    # x_ref : (1, C_tile, H, W)   unpadded input tile (native dtype)
    # mh_ref: (W, Wo)             horizontal taps + stride + pad (x.dtype)
    # mv_ref: (Ho, H)             vertical   taps + stride + pad (f32)
    # o_ref : (1, C_tile, Ho, Wo)
    c_tile, h, w = x_ref.shape[1], x_ref.shape[2], x_ref.shape[3]
    ho, wo = o_ref.shape[2], o_ref.shape[3]

    # Horizontal pass as ONE tall 2-D MXU matmul: weights pushed once,
    # M = c_tile*H rows streamed, contraction over the lane axis (W).
    # (layout-free reshape when H is a multiple of 8.)
    xm = x_ref[0].reshape(c_tile * h, w)
    t = jax.lax.dot_general(xm, mh_ref[...], (((1,), (0,)), ((), ())),
                            preferred_element_type=jnp.float32)
    t = t.reshape(c_tile, h, wo)                       # (C, H, Wo) f32

    # Vertical pass: batched matmul; only the tiny (Ho, H) tap matrix is
    # broadcast across channels (negligible next to the input tile).
    mv = jnp.broadcast_to(mv_ref[...], (c_tile, ho, h))
    y = jax.lax.dot_general(mv, t, (((2,), (1,)), ((0,), (0,))),
                            preferred_element_type=jnp.float32)

    o_ref[0] = y.astype(o_ref.dtype)


# ---------------------------------------------------------------------------
# Tiling / VMEM sizing (generation aware)
# ---------------------------------------------------------------------------
def _vmem_budget_bytes():
    try:
        cap = int(pltpu.get_tpu_info().vmem_capacity_bytes)
    except Exception:
        cap = 64 * 1024 * 1024  # safe fallback (v7x per-TC capacity)
    # ~25% headroom for Mosaic internal scratch / pipelining machinery:
    # ~96 MiB on v5e/v6e (128 MiB VMEM), ~48 MiB on v7x (64 MiB per TC).
    budget = (cap * 3) // 4
    return int(min(max(budget, 16 * 1024 * 1024), 100 * 1024 * 1024))


def _block_bytes(c_tile, h, w, ho, wo, itemsize):
    """Realistic per-step VMEM footprint (double-buffered I/O + temporaries)."""
    in_b = c_tile * h * w * itemsize          # input block (native dtype)
    out_b = c_tile * ho * wo * itemsize       # output block (native dtype)
    t_b = c_tile * h * wo * 4                 # f32 intermediate of pass 1
    mvb_b = c_tile * ho * h * 4               # broadcast vertical taps (f32)
    y_b = c_tile * ho * wo * 4                # f32 result before cast
    taps = (w * wo + ho * h) * 4              # tap matrices
    return 2 * in_b + 2 * out_b + t_b + mvb_b + y_b + 2 * taps


def _pick_c_tile(n, c, h, w, ho, wo, itemsize, budget):
    best = 1
    for d in range(1, c + 1):
        if c % d != 0:
            continue
        if _block_bytes(d, h, w, ho, wo, itemsize) > budget:
            continue
        # Keep >= 2 steps along the parallel grid axes when N == 1 so both
        # v7x TensorCores get work (irrelevant on 1-TC v5e/v6e, harmless).
        if n == 1 and c >= 2 and (c // d) < 2:
            continue
        best = d
    return best


# ---------------------------------------------------------------------------
# Wrapper: NCHW end-to-end, no jnp.pad pass -- padding lives in mh/mv.
# ---------------------------------------------------------------------------
def blurpool(x_nchw, *, channels, pad_type="reflect", filt_size=4, stride=2,
             pad_off=0):
    assert x_nchw.shape[1] == channels
    n, c, h, w = (int(s) for s in x_nchw.shape)
    left, right, top, bottom = _pad_sizes(filt_size, pad_off)
    mode = _JNP_PAD_MODE[pad_type]

    if filt_size == 1:
        # No blur: plain (optionally padded) strided subsampling (pure glue).
        if pad_off == 0:
            return x_nchw[:, :, ::stride, ::stride]
        xp = jnp.pad(x_nchw, ((0, 0), (0, 0), (top, bottom), (left, right)),
                     mode=mode)
        return xp[:, :, ::stride, ::stride]

    hp, wp = h + top + bottom, w + left + right
    ho = (hp - filt_size) // stride + 1
    wo = (wp - filt_size) // stride + 1

    mh_np, mv_np = _conv_matrices(filt_size, stride, h, w, ho, wo,
                                  top, left, mode)
    # Taps in the input dtype (exact for binomial taps & their boundary sums
    # in bf16) -> single-pass MXU matmul for bf16 inputs; f32 otherwise.
    tap_dtype = (x_nchw.dtype
                 if jnp.issubdtype(x_nchw.dtype, jnp.floating)
                 else jnp.float32)
    mh = jnp.asarray(mh_np, dtype=tap_dtype)
    mv = jnp.asarray(mv_np, dtype=jnp.float32)   # contracts the f32 intermediate

    itemsize = np.dtype(x_nchw.dtype).itemsize
    budget = _vmem_budget_bytes()
    c_tile = _pick_c_tile(n, c, h, w, ho, wo, itemsize, budget)
    grid = (n, c // c_tile)

    flops = 2 * n * c * (h * w * wo + ho * h * wo)
    bytes_accessed = (n * c * (h * w + ho * wo) * itemsize
                      + (w * wo + ho * h) * 4)

    out = pl.pallas_call(
        _blurpool_kernel,
        out_shape=jax.ShapeDtypeStruct((n, c, ho, wo), x_nchw.dtype),
        grid=grid,
        in_specs=[
            pl.BlockSpec((1, c_tile, h, w), lambda ni, ci: (ni, ci, 0, 0)),
            pl.BlockSpec((w, wo), lambda ni, ci: (0, 0)),
            pl.BlockSpec((ho, h), lambda ni, ci: (0, 0)),
        ],
        out_specs=pl.BlockSpec((1, c_tile, ho, wo),
                               lambda ni, ci: (ni, ci, 0, 0)),
        compiler_params=pltpu.CompilerParams(
            dimension_semantics=("parallel", "parallel"),
            vmem_limit_bytes=int(budget)),
        cost_estimate=pl.CostEstimate(flops=flops, transcendentals=0,
                                      bytes_accessed=bytes_accessed),
    )(x_nchw, mh, mv)
    return out


# ---------------------------------------------------------------------------
# Pure-JAX reference (explicit pad + direct fs*fs tap conv in f32); used only
# for the self-check, formulated independently of the folded-pad kernel path.
# ---------------------------------------------------------------------------
def _blurpool_ref(x_nchw, *, channels, filt_size=4, stride=2, pad_off=0,
                  pad_type="reflect"):
    n, c, h, w = x_nchw.shape
    left, right, top, bottom = _pad_sizes(filt_size, pad_off)
    x = jnp.pad(x_nchw, ((0, 0), (0, 0), (top, bottom), (left, right)),
                mode=_JNP_PAD_MODE[pad_type]).astype(jnp.float32)
    a = create_binomial_filter(filt_size)
    f = a[:, None] * a[None, :]
    f = f / f.sum()
    hp, wp = x.shape[2], x.shape[3]
    ho = (hp - filt_size) // stride + 1
    wo = (wp - filt_size) // stride + 1
    acc = jnp.zeros((n, c, ho, wo), jnp.float32)
    for u in range(filt_size):
        for v in range(filt_size):
            acc = acc + float(f[u, v]) * x[:, :, u:u + stride * ho:stride,
                                           v:v + stride * wo:stride]
    return acc


if __name__ == "__main__":
    key = jax.random.PRNGKey(0)
    N, C, H, W = 2, 4, 16, 16
    x = jax.random.normal(key, (N, C, H, W), dtype=jnp.float32)

    y = blurpool(x, channels=C, pad_type="reflect", filt_size=4, stride=2,
                 pad_off=0)
    y = jax.block_until_ready(y)

    y_ref = _blurpool_ref(x, channels=C, filt_size=4, stride=2, pad_off=0,
                          pad_type="reflect")
    assert y.shape == (N, C, H // 2, W // 2), y.shape
    # Tolerance note: with default matmul precision the MXU evaluates the f32
    # contractions with bf16-decomposed passes (~1e-2 worst-case abs error
    # here); any structural bug (taps / stride / folded padding) would give
    # O(0.1 .. 1) errors.
    assert np.allclose(np.asarray(y), np.asarray(y_ref), atol=2e-2), \
        "kernel mismatch vs reference"

    print("KERNEL_OK")
</pallas_src>

<mosaic_0001>
module attributes {stable_mosaic.version = 11 : i64} {
  func.func @_blurpool_kernel(%arg0: i32, %arg1: i32, %arg2: memref<1x4x16x16xf32, #tpu.memory_space<vmem>>, %arg3: memref<16x8xf32, #tpu.memory_space<vmem>>, %arg4: memref<8x16xf32, #tpu.memory_space<vmem>>, %arg5: memref<1x4x8x8xf32, #tpu.memory_space<vmem>>) attributes {dimension_semantics = [#tpu.dimension_semantics<parallel>, #tpu.dimension_semantics<parallel>], iteration_bounds = array<i64: 2, 1>, scalar_prefetch = 0 : i64, scratch_operands = 0 : i64, tpu.core_type = #tpu.core_type<tc>, window_params = [{transform_indices = @transform_0, window_bounds = array<i64: 1, 4, 16, 16>}, {pipeline_mode = #tpu.pipeline_mode<synchronous>, transform_indices = @transform_1, window_bounds = array<i64: 16, 8>}, {pipeline_mode = #tpu.pipeline_mode<synchronous>, transform_indices = @transform_2, window_bounds = array<i64: 8, 16>}, {transform_indices = @transform_3, window_bounds = array<i64: 1, 4, 8, 8>}]} {
    %c0 = arith.constant 0 : index
    %c0_0 = arith.constant 0 : index
    %c0_1 = arith.constant 0 : index
    %c0_2 = arith.constant 0 : index
    %0 = vector.load %arg2[%c0, %c0_0, %c0_1, %c0_2] : memref<1x4x16x16xf32, #tpu.memory_space<vmem>>, vector<1x4x16x16xf32>
    %1 = vector.shape_cast %0 : vector<1x4x16x16xf32> to vector<4x16x16xf32>
    %2 = vector.shape_cast %1 : vector<4x16x16xf32> to vector<64x16xf32>
    %c0_3 = arith.constant 0 : index
    %c0_4 = arith.constant 0 : index
    %3 = vector.load %arg3[%c0_3, %c0_4] : memref<16x8xf32, #tpu.memory_space<vmem>>, vector<16x8xf32>
    %cst = arith.constant dense<0.000000e+00> : vector<64x8xf32>
    %4 = tpu.matmul %2, %3, %cst {dimension_numbers = #tpu.dot_dimension_numbers<[1], [0], [0], [1], [0, 0, 1, 1], [], []>} : vector<64x16xf32>, vector<16x8xf32>, vector<64x8xf32> -> vector<64x8xf32>
    %5 = vector.shape_cast %4 : vector<64x8xf32> to vector<4x16x8xf32>
    %c0_5 = arith.constant 0 : index
    %c0_6 = arith.constant 0 : index
    %6 = vector.load %arg4[%c0_5, %c0_6] : memref<8x16xf32, #tpu.memory_space<vmem>>, vector<8x16xf32>
    %7 = vector.shape_cast %6 : vector<8x16xf32> to vector<1x8x16xf32>
    %8 = vector.broadcast %7 : vector<1x8x16xf32> to vector<4x8x16xf32>
    %cst_7 = arith.constant dense<0.000000e+00> : vector<4x8x8xf32>
    %9 = tpu.matmul %8, %5, %cst_7 {dimension_numbers = #tpu.dot_dimension_numbers<[2], [1], [1], [2], [0, 0, 0, 1, 1, 2], [0], [0]>} : vector<4x8x16xf32>, vector<4x16x8xf32>, vector<4x8x8xf32> -> vector<4x8x8xf32>
    %c0_8 = arith.constant 0 : index
    %c0_9 = arith.constant 0 : index
    %c0_10 = arith.constant 0 : index
    %c0_11 = arith.constant 0 : index
    %10 = vector.load %arg5[%c0_8, %c0_9, %c0_10, %c0_11] : memref<1x4x8x8xf32, #tpu.memory_space<vmem>>, vector<1x4x8x8xf32>
    %11 = vector.shape_cast %10 : vector<1x4x8x8xf32> to vector<4x8x8xf32>
    %12 = vector.shape_cast %9 : vector<4x8x8xf32> to vector<1x4x8x8xf32>
    tpu.vector_store %arg5[%c0_8, %c0_9, %c0_10, %c0_11], %12 {strides = array<i32>} : memref<1x4x8x8xf32, #tpu.memory_space<vmem>>, vector<1x4x8x8xf32>,
    return
  }
  func.func @transform_0(%arg0: i32, %arg1: i32) -> (i32, i32, i32, i32) {
    %c0_i32 = arith.constant 0 : i32
    %c0_i32_0 = arith.constant 0 : i32
    %c0_i32_1 = arith.constant 0 : i32
    return %arg0, %arg1, %c0_i32, %c0_i32_0 : i32, i32, i32, i32
  }
  func.func @transform_1(%arg0: i32, %arg1: i32) -> (i32, i32) {
    %c0_i32 = arith.constant 0 : i32
    %c0_i32_0 = arith.constant 0 : i32
    %c0_i32_1 = arith.constant 0 : i32
    return %c0_i32, %c0_i32_0 : i32, i32
  }
  func.func @transform_2(%arg0: i32, %arg1: i32) -> (i32, i32) {
    %c0_i32 = arith.constant 0 : i32
    %c0_i32_0 = arith.constant 0 : i32
    %c0_i32_1 = arith.constant 0 : i32
    return %c0_i32, %c0_i32_0 : i32, i32
  }
  func.func @transform_3(%arg0: i32, %arg1: i32) -> (i32, i32, i32, i32) {
    %c0_i32 = arith.constant 0 : i32
    %c0_i32_0 = arith.constant 0 : i32
    %c0_i32_1 = arith.constant 0 : i32
    return %arg0, %arg1, %c0_i32, %c0_i32_0 : i32, i32, i32, i32
  }
}

</mosaic_0001>

<llo_original>
// kernel: tpu_custom_call.1
$region0: #{tpu_custom_call.1}
  #allocation0 [shape = 'u32[]', space=smem, size = 0x4, offset = 0x4, fixed_abs, tag = 'smem constant byte address 0x4 - core index']
  #allocation1 [shape = 'u32[72,128]{1,0:T(1,128)}', space=vmem, size = 0x9000, scoped, tag = 'internal scratch']
  %s0 = inlined_call_operand.hbm [shape: f32[2,4,16,16], index: 0, kind: input, shape index: {}]
  %s1 = inlined_call_operand.vmem [shape: f32[16,8], index: 1, kind: input, shape index: {}]
  %s2 = inlined_call_operand.vmem [shape: f32[8,16], index: 2, kind: input, shape index: {}]
  %s3 = inlined_call_operand.hbm [shape: f32[2,4,8,8], index: 3, kind: output, shape index: {}]
  %s4 = sld [smem:[#allocation0]]
  $region49: #{tpu_custom_call.1} parent=0
    _
  %s6 = ssub.s32 1, %s4
  %s7 = scalar_select 0, %s6, %s4
  $region1: #{tpu_custom_call.1} parent=0
    #allocation2 [shape = 'u8[65536]{0}', space=vmem, size = 0x10000, scoped, tag = 'input window, operand 0']
    #allocation3 [shape = 's32[2]{0}', space=sflag, size = 0x8, scoped, tag = 'scoped memory for tpu_custom_call.1']
    #allocation4 [shape = 's32[2]{0}', space=sflag, size = 0x8, scoped, tag = 'scoped memory for tpu_custom_call.1']
    #allocation5 [shape = 'u8[32768]{0}', space=vmem, size = 0x8000, scoped, tag = 'output window, operand 0']
    %8 = vsyncpa [#allocation3], 0
    %s9 = scalar_lea.sflag [#allocation3], 1
    %10 = vsyncpa %s9, 0
    %11 = vsyncpa [#allocation4], 0
    %s12 = scalar_lea.sflag [#allocation4], 1
    %13 = vsyncpa %s12, 0
    loop: start=0, step=1, limit=4
    $region2: #{tpu_custom_call.1} parent=1 // loop_pre_header
      _
    $region3: #{tpu_custom_call.1} parent=1 // loop_header
      %s15 = sphi 0, %s19
      %p16 = scmp.ge.s32.totalorder %s15, 4
      %s22 = sphi 0, %s34
      %s23 = sphi 0, %s30
      %s24 = sphi 0, %s22
      %s25 = sphi 0, %s23
      %s26 = sphi 0, %s24
      %s27 = sphi 0, %s25
      %s39 = sphi 0, %s41
      %s42 = sphi 0, %s39
      %s43 = sphi 0, %s42
      %s59 = sphi 0, %s43
      %s63 = sphi 0, %s63
      %s65 = sphi 0, %s63
      %s66 = sphi 0, %s65
      %s80 = sphi 0, %s66
      %s84 = sphi 0, %s84
      %s86 = sphi 0, %s84
      %s87 = sphi 0, %s86
      %s101 = sphi 0, %s87
      %s109 = sphi 0, %s111
      %s112 = sphi 0, %s109
      %s113 = sphi 0, %s112
      %s129 = sphi 0, %s113
    $region4: #{tpu_custom_call.1} parent=1 // loop_header_branch
      %18 = sbr.rel (%p16) target = $region8
    $region5: #{tpu_custom_call.1} parent=1 // loop_body
      %s20 = ssub.s32 %s15, 1
      %s21 = ssub.s32 %s15, 2
      %s28 = sadd.s32 1, %s23
      %p29 = scmp.ge.s32.totalorder %s28, 1
      %s30 = scalar_select %p29, 0, %s28
      %s31 = sadd.s32 1, %s22
      %s32 = scalar_select %p29, %s31, %s22
      %p33 = scmp.ge.s32.totalorder %s32, 2
      %s34 = scalar_select %p33, 0, %s32
      %s35 = ssub.s32 %s22, %s34
      %s36 = ssub.s32 %s23, %s30
      %s37 = sor.u32 %s35, %s36
      %p38 = scmp.eq.s32.totalorder %s37, 0
      %s40 = sadd.s32 %s39, 1
      %s41 = scalar_select %p38, %s39, %s40
      %p44 = pneg %p38
      %p45 = scmp.eq.s32.totalorder %s15, 1
      %p46 = por %p44, %p45
      %p47 = scmp.ne.s32.totalorder %s39, %s42
      %p48 = scmp.eq.s32.totalorder %s15, 0
      %p49 = por %p47, %p48
      %p50 = scmp.ne.s32.totalorder %s39, %s42
      %p51 = scmp.eq.s32.totalorder %s20, 1
      %p52 = por %p50, %p51
      %p53 = scmp.ne.s32.totalorder %s42, %s43
      %p54 = scmp.eq.s32.totalorder %s20, 0
      %p55 = por %p53, %p54
      %p56 = scmp.ne.s32.totalorder %s42, %s43
      %p57 = scmp.eq.s32.totalorder %s21, 1
      %p58 = por %p56, %p57
      %p60 = scmp.ne.s32.totalorder %s43, %s59
      %p61 = scmp.eq.s32.totalorder %s21, 0
      %p62 = por %p60, %p61
      %s64 = sadd.s32 %s63, 1
      %p67 = scmp.eq.s32.totalorder %s15, 1
      %p68 = scmp.ne.s32.totalorder %s63, %s65
      %p69 = scmp.eq.s32.totalorder %s15, 0
      %p70 = por %p68, %p69
      %p71 = scmp.ne.s32.totalorder %s63, %s65
      %p72 = scmp.eq.s32.totalorder %s20, 1
      %p73 = por %p71, %p72
      %p74 = scmp.ne.s32.totalorder %s65, %s66
      %p75 = scmp.eq.s32.totalorder %s20, 0
      %p76 = por %p74, %p75
      %p77 = scmp.ne.s32.totalorder %s65, %s66
      %p78 = scmp.eq.s32.totalorder %s21, 1
      %p79 = por %p77, %p78
      %p81 = scmp.ne.s32.totalorder %s66, %s80
      %p82 = scmp.eq.s32.totalorder %s21, 0
      %p83 = por %p81, %p82
      %s85 = sadd.s32 %s84, 1
      %p88 = scmp.eq.s32.totalorder %s15, 1
      %p89 = scmp.ne.s32.totalorder %s84, %s86
      %p90 = scmp.eq.s32.totalorder %s15, 0
      %p91 = por %p89, %p90
      %p92 = scmp.ne.s32.totalorder %s84, %s86
      %p93 = scmp.eq.s32.totalorder %s20, 1
      %p94 = por %p92, %p93
      %p95 = scmp.ne.s32.totalorder %s86, %s87
      %p96 = scmp.eq.s32.totalorder %s20, 0
      %p97 = por %p95, %p96
      %p98 = scmp.ne.s32.totalorder %s86, %s87
      %p99 = scmp.eq.s32.totalorder %s21, 1
      %p100 = por %p98, %p99
      %p102 = scmp.ne.s32.totalorder %s87, %s101
      %p103 = scmp.eq.s32.totalorder %s21, 0
      %p104 = por %p102, %p103
      %s105 = ssub.s32 %s22, %s34
      %s106 = ssub.s32 %s23, %s30
      %s107 = sor.u32 %s105, %s106
      %p108 = scmp.eq.s32.totalorder %s107, 0
      %s110 = sadd.s32 %s109, 1
      %s111 = scalar_select %p108, %s109, %s110
      %p114 = pneg %p108
      %p115 = scmp.eq.s32.totalorder %s15, 1
      %p116 = por %p114, %p115
      %p117 = scmp.ne.s32.totalorder %s109, %s112
      %p118 = scmp.eq.s32.totalorder %s15, 0
      %p119 = por %p117, %p118
      %p120 = scmp.ne.s32.totalorder %s109, %s112
      %p121 = scmp.eq.s32.totalorder %s20, 1
      %p122 = por %p120, %p121
      %p123 = scmp.ne.s32.totalorder %s112, %s113
      %p124 = scmp.eq.s32.totalorder %s20, 0
      %p125 = por %p123, %p124
      %p126 = scmp.ne.s32.totalorder %s112, %s113
      %p127 = scmp.eq.s32.totalorder %s21, 1
      %p128 = por %p126, %p127
      %p130 = scmp.ne.s32.totalorder %s113, %s129
      %p131 = scmp.eq.s32.totalorder %s21, 0
      %p132 = por %p130, %p131
      %p133 = scmp.le.s32.totalorder 1, %s15
      %p134 = scmp.lt.s32.totalorder %s15, 3
      %p135 = pnand %p133, %p134
      %p136 = pneg %p135
      // Predicated region
      $region9: #{tpu_custom_call.1} parent=5 // pred_check
        _
      $region10: #{tpu_custom_call.1} parent=5 // pred_check_branch
        %138 = sbr.rel (%p135) target = $region12
      $region11: #{tpu_custom_call.1} parent=5 // pred_region
        %s139 = ssub.s32 %s15, 1
        // Predicated region
        $region13: #{tpu_custom_call.1} parent=11 // pred_check
          %p140 = pneg %p76
        $region14: #{tpu_custom_call.1} parent=11 // pred_check_branch
          %142 = sbr.rel (%p140) target = $region16
        $region15: #{tpu_custom_call.1} parent=11 // pred_region
          _
        $region16: #{tpu_custom_call.1} parent=11 // pred_fallthru
          _
        // Predicated region
        $region17: #{tpu_custom_call.1} parent=11 // pred_check
          %p143 = pneg %p97
        $region18: #{tpu_custom_call.1} parent=11 // pred_check_branch
          %145 = sbr.rel (%p143) target = $region20
        $region19: #{tpu_custom_call.1} parent=11 // pred_region
          _
        $region20: #{tpu_custom_call.1} parent=11 // pred_fallthru
          _
      $region12: #{tpu_custom_call.1} parent=5 // pred_fallthru
        _
      %p146 = scmp.lt.s32.totalorder %s15, 2
      // Predicated region
      $region21: #{tpu_custom_call.1} parent=5 // pred_check
        %p147 = pneg %p146
      $region22: #{tpu_custom_call.1} parent=5 // pred_check_branch
        %149 = sbr.rel (%p147) target = $region24
      $region23: #{tpu_custom_call.1} parent=5 // pred_region
        // Predicated region
        $region25: #{tpu_custom_call.1} parent=23 // pred_check
          %p150 = pneg %p49
        $region26: #{tpu_custom_call.1} parent=23 // pred_check_branch
          %152 = sbr.rel (%p150) target = $region28
        $region27: #{tpu_custom_call.1} parent=23 // pred_region
          %s153 = sand.u32 %s39, 1
          %s154 = scalar_lea.sflag [#allocation3], %s153
          %s155 = sand.u32 %s39, 1
          %s156 = smul.addr %s155, 64
          %s157 = scalar_lea.vmem [#allocation2], %s156
          %s158 = smul.u32 4, %s23
          %160 = vsyncadd %s154, 0
          %s161 = smul.addr %s158, 2
          %s162 = smul.addr %s22, 8
          %s163 = sadd.s32 %s161, %s162
          %s164 = smul.addr %s163, 8
          %s165 = scalar_lea.hbm %s0, %s164
          %s166 = sshll.u32 %s165, 4
          %s167 = int_to_ptr.hbm [resolvable:$true] %s166
          %s168 = sshll.u32 %s157, 4
          %s169 = int_to_ptr.vmem [resolvable:$true] %s168
          %174 = dma.hbm_to_vmem [thread:$0]  %s167, 1024, %s169, %s154, 128, 128, 8
        $region28: #{tpu_custom_call.1} parent=23 // pred_fallthru
          _
      $region24: #{tpu_custom_call.1} parent=5 // pred_fallthru
        _
      %p175 = scmp.le.s32.totalorder 1, %s15
      %p176 = scmp.lt.s32.totalorder %s15, 3
      %p177 = pnand %p175, %p176
      %p178 = pneg %p177
      // Predicated region
      $region29: #{tpu_custom_call.1} parent=5 // pred_check
        _
      $region30: #{tpu_custom_call.1} parent=5 // pred_check_branch
        %180 = sbr.rel (%p177) target = $region32
      $region31: #{tpu_custom_call.1} parent=5 // pred_region
        %s181 = ssub.s32 %s15, 1
        %s182 = sand.u32 %s42, 1
        %s183 = scalar_lea.sflag [#allocation3], %s182
        %s184 = sand.u32 %s42, 1
        %s185 = smul.addr %s184, 64
        %s186 = scalar_lea.vmem [#allocation2], %s185
        // Predicated region
        $region33: #{tpu_custom_call.1} parent=31 // pred_check
          %p187 = pneg %p55
        $region34: #{tpu_custom_call.1} parent=31 // pred_check_branch
          %189 = sbr.rel (%p187) target = $region36
        $region35: #{tpu_custom_call.1} parent=31 // pred_region
          %191 = dma.done %s183, 1024
        $region36: #{tpu_custom_call.1} parent=31 // pred_fallthru
          _
        %s192 = sand.u32 %s42, 1
        %s193 = scalar_lea.sflag [#allocation3], %s192
        %s194 = sand.u32 %s42, 1
        %s195 = smul.addr %s194, 64
        %s196 = scalar_lea.vmem [#allocation2], %s195
        %p197 = pneg %p55
        %p198 = pneg %p52
        %p199 = pneg %p76
        %p200 = pneg %p73
        %p201 = pneg %p97
        %p202 = pneg %p94
        %p203 = pneg %p125
        %p204 = pneg %p122
        %s205 = sand.u32 %s112, 1
        %s206 = scalar_lea.sflag [#allocation4], %s205
        %s207 = sand.u32 %s112, 1
        %s208 = smul.addr %s207, 32
        %s209 = scalar_lea.vmem [#allocation5], %s208
        %s210 = smul.u32 4, %s25
        %s211 = smul.u32 4, %s25
        %v212 = vld [vmem:[%s186] sm:$0xff]
        %v213 = vld [vmem:[%s186 + $0x8] sm:$0xff]
        %v214 = vld [vmem:[%s186 + $0x10] sm:$0xff]
        %v215 = vld [vmem:[%s186 + $0x18] sm:$0xff]
        %v216 = vld [vmem:[%s186 + $0x20] sm:$0xff]
        %v217 = vld [vmem:[%s186 + $0x28] sm:$0xff]
        %v218 = vld [vmem:[%s186 + $0x30] sm:$0xff]
        %v219 = vld [vmem:[%s186 + $0x38] sm:$0xff]
        %v220 = vld [vmem:[%s1] sm:$0xff]
        %v221 = vld [vmem:[%s1 + $0x8] sm:$0xff]
        %vm222 = vcmask 130048
        %v224 = vsel %vm222, %v212, 0
        %v227 = vsel %vm222, %v213, 0
        %v230 = vsel %vm222, %v214, 0
        %v233 = vsel %vm222, %v215, 0
        %v236 = vsel %vm222, %v216, 0
        %v239 = vsel %vm222, %v217, 0
        %v242 = vsel %vm222, %v218, 0
        %v245 = vsel %vm222, %v219, 0
        %247 = vmatpush.msra.mxu0 0.0
        %248 = vmatpush.msra.mxu0 0.0
        %249 = vmatpush.msra.mxu0 0.0
        %250 = vmatpush.msra.mxu0 0.0
        %251 = vmatpush.msra.mxu0 0.0
        %252 = vmatpush.msra.mxu0 0.0
        %253 = vmatpush.msra.mxu0 0.0
        %254 = vmatpush.msra.mxu0 0.0
        %255 = vmatpush.msra.mxu0 0.0
        %256 = vmatpush.msra.mxu0 0.0
        %257 = vmatpush.msra.mxu0 0.0
        %258 = vmatpush.msra.mxu0 0.0
        %259 = vmatpush.msra.mxu0 0.0
        %260 = vmatpush.msra.mxu0 0.0
        %261 = vmatpush.msra.mxu0 %v221
        %262 = vmatpush.msra.mxu0 %v220
        %263 = vmatmul.f32.gmra.mxu0 %v224
        %v264 = vpop.f32.mrf.mxu0
        %v265 = vadd.f32 0.0, %v264
        %266 = vmatmul.f32.gmra.mxu0 %v227
        %v267 = vpop.f32.mrf.mxu0
        %v268 = vadd.f32 0.0, %v267
        %269 = vmatmul.f32.gmra.mxu0 %v230
        %v270 = vpop.f32.mrf.mxu0
        %v271 = vadd.f32 0.0, %v270
        %272 = vmatmul.f32.gmra.mxu0 %v233
        %v273 = vpop.f32.mrf.mxu0
        %v274 = vadd.f32 0.0, %v273
        %275 = vmatmul.f32.gmra.mxu0 %v236
        %v276 = vpop.f32.mrf.mxu0
        %v277 = vadd.f32 0.0, %v276
        %278 = vmatmul.f32.gmra.mxu0 %v239
        %v279 = vpop.f32.mrf.mxu0
        %v280 = vadd.f32 0.0, %v279
        %281 = vmatmul.f32.gmra.mxu0 %v242
        %v282 = vpop.f32.mrf.mxu0
        %v283 = vadd.f32 0.0, %v282
        %284 = vmatmul.f32.gmra.mxu0 %v245
        %v285 = vpop.f32.mrf.mxu0
        %v286 = vadd.f32 0.0, %v285
        %287 = vdwg.mxu0
        %v288 = vld [vmem:[%s2] sm:$0xff]
        %v290 = vsel %vm222, %v288, 0
        %292 = vmatpush.msra.mxu0 0.0
        %293 = vmatpush.msra.mxu0 0.0
        %294 = vmatpush.msra.mxu0 0.0
        %295 = vmatpush.msra.mxu0 0.0
        %296 = vmatpush.msra.mxu0 0.0
        %297 = vmatpush.msra.mxu0 0.0
        %298 = vmatpush.msra.mxu0 0.0
        %299 = vmatpush.msra.mxu0 0.0
        %300 = vmatpush.msra.mxu0 0.0
        %301 = vmatpush.msra.mxu0 0.0
        %302 = vmatpush.msra.mxu0 0.0
        %303 = vmatpush.msra.mxu0 0.0
        %304 = vmatpush.msra.mxu0 0.0
        %305 = vmatpush.msra.mxu0 0.0
        %306 = vmatpush.msra.mxu0 %v268
        %307 = vmatpush.msra.mxu0 %v265
        %308 = vmatmul.f32.gmra.mxu0 %v290
        %v309 = vpop.f32.mrf.mxu0
        %v310 = vadd.f32 0.0, %v309
        %311 = vdwg.mxu0
        %312 = vmatpush.msra.mxu0 0.0
        %313 = vmatpush.msra.mxu0 0.0
        %314 = vmatpush.msra.mxu0 0.0
        %315 = vmatpush.msra.mxu0 0.0
        %316 = vmatpush.msra.mxu0 0.0
        %317 = vmatpush.msra.mxu0 0.0
        %318 = vmatpush.msra.mxu0 0.0
        %319 = vmatpush.msra.mxu0 0.0
        %320 = vmatpush.msra.mxu0 0.0
        %321 = vmatpush.msra.mxu0 0.0
        %322 = vmatpush.msra.mxu0 0.0
        %323 = vmatpush.msra.mxu0 0.0
        %324 = vmatpush.msra.mxu0 0.0
        %325 = vmatpush.msra.mxu0 0.0
        %326 = vmatpush.msra.mxu0 %v274
        %327 = vmatpush.msra.mxu0 %v271
        %328 = vmatmul.f32.gmra.mxu0 %v290
        %v329 = vpop.f32.mrf.mxu0
        %v330 = vadd.f32 0.0, %v329
        %331 = vdwg.mxu0
        %332 = vmatpush.msra.mxu0 0.0
        %333 = vmatpush.msra.mxu0 0.0
        %334 = vmatpush.msra.mxu0 0.0
        %335 = vmatpush.msra.mxu0 0.0
        %336 = vmatpush.msra.mxu0 0.0
        %337 = vmatpush.msra.mxu0 0.0
        %338 = vmatpush.msra.mxu0 0.0
        %339 = vmatpush.msra.mxu0 0.0
        %340 = vmatpush.msra.mxu0 0.0
        %341 = vmatpush.msra.mxu0 0.0
        %342 = vmatpush.msra.mxu0 0.0
        %343 = vmatpush.msra.mxu0 0.0
        %344 = vmatpush.msra.mxu0 0.0
        %345 = vmatpush.msra.mxu0 0.0
        %346 = vmatpush.msra.mxu0 %v280
        %347 = vmatpush.msra.mxu0 %v277
        %348 = vmatmul.f32.gmra.mxu0 %v290
        %v349 = vpop.f32.mrf.mxu0
        %v350 = vadd.f32 0.0, %v349
        %351 = vdwg.mxu0
        %352 = vmatpush.msra.mxu0 0.0
        %353 = vmatpush.msra.mxu0 0.0
        %354 = vmatpush.msra.mxu0 0.0
        %355 = vmatpush.msra.mxu0 0.0
        %356 = vmatpush.msra.mxu0 0.0
        %357 = vmatpush.msra.mxu0 0.0
        %358 = vmatpush.msra.mxu0 0.0
        %359 = vmatpush.msra.mxu0 0.0
        %360 = vmatpush.msra.mxu0 0.0
        %361 = vmatpush.msra.mxu0 0.0
        %362 = vmatpush.msra.mxu0 0.0
        %363 = vmatpush.msra.mxu0 0.0
        %364 = vmatpush.msra.mxu0 0.0
        %365 = vmatpush.msra.mxu0 0.0
        %366 = vmatpush.msra.mxu0 %v286
        %367 = vmatpush.msra.mxu0 %v283
        %368 = vmatmul.f32.gmra.mxu0 %v290
        %v369 = vpop.f32.mrf.mxu0
        %v370 = vadd.f32 0.0, %v369
        %371 = vdwg.mxu0
        %vm372 = vcmask 64512
        %373 = vst.msk [vmem:[%s209] sm:$0xff] %vm372, %v310
        %374 = vst.msk [vmem:[%s209 + $0x8] sm:$0xff] %vm372, %v330
        %375 = vst.msk [vmem:[%s209 + $0x10] sm:$0xff] %vm372, %v350
        %376 = vst.msk [vmem:[%s209 + $0x18] sm:$0xff] %vm372, %v370
        %s377 = sand.u32 %s112, 1
        %s378 = scalar_lea.sflag [#allocation4], %s377
        %s379 = sand.u32 %s112, 1
        %s380 = smul.addr %s379, 32
        %s381 = scalar_lea.vmem [#allocation5], %s380
        // Predicated region
        $region37: #{tpu_custom_call.1} parent=31 // pred_check
          %p382 = pneg %p122
        $region38: #{tpu_custom_call.1} parent=31 // pred_check_branch
          %384 = sbr.rel (%p382) target = $region40
        $region39: #{tpu_custom_call.1} parent=31 // pred_region
          %s385 = smul.u32 4, %s25
          %387 = vsyncadd %s378, 0
          %s388 = smul.addr %s24, 4
          %s389 = sadd.s32 %s385, %s388
          %s390 = smul.addr %s389, 8
          %s391 = scalar_lea.hbm %s3, %s390
          %s392 = sshll.u32 %s381, 4
          %s393 = int_to_ptr.vmem [resolvable:$true] %s392
          %s394 = sshll.u32 %s391, 4
          %s395 = int_to_ptr.hbm [resolvable:$true] %s394
          %400 = dma.vmem_to_hbm [thread:$0]  %s393, 512, %s395, %s378, 128, 128, 8
        $region40: #{tpu_custom_call.1} parent=31 // pred_fallthru
          _
      $region32: #{tpu_custom_call.1} parent=5 // pred_fallthru
        _
      %p401 = scmp.le.s32.totalorder 2, %s15
      // Predicated region
      $region41: #{tpu_custom_call.1} parent=5 // pred_check
        %p402 = pneg %p401
      $region42: #{tpu_custom_call.1} parent=5 // pred_check_branch
        %404 = sbr.rel (%p402) target = $region44
      $region43: #{tpu_custom_call.1} parent=5 // pred_region
        %s405 = ssub.s32 %s15, 2
        // Predicated region
        $region45: #{tpu_custom_call.1} parent=43 // pred_check
          %p406 = pneg %p128
        $region46: #{tpu_custom_call.1} parent=43 // pred_check_branch
          %408 = sbr.rel (%p406) target = $region48
        $region47: #{tpu_custom_call.1} parent=43 // pred_region
          %s409 = sand.u32 %s113, 1
          %s410 = scalar_lea.sflag [#allocation4], %s409
          %s411 = sand.u32 %s113, 1
          %s412 = smul.addr %s411, 32
          %s413 = scalar_lea.vmem [#allocation5], %s412
          %415 = dma.done %s410, 512
        $region48: #{tpu_custom_call.1} parent=43 // pred_fallthru
          _
      $region44: #{tpu_custom_call.1} parent=5 // pred_fallthru
        _
    $region6: #{tpu_custom_call.1} parent=1 // loop_footer
      %s19 = sadd.s32 1, %s15
    $region7: #{tpu_custom_call.1} parent=1 // loop_footer_branch
      %14 = sbr.rel target = $region3
    $region8: #{tpu_custom_call.1} parent=1 // loop_exit
      _
    %416 = vsyncpa [#allocation3], 1
    %s417 = scalar_lea.sflag [#allocation3], 1
    %418 = vsyncpa %s417, 1
    %419 = vsyncpa [#allocation4], 1
    %s420 = scalar_lea.sflag [#allocation4], 1
    %421 = vsyncpa %s420, 1

</llo_original>
